<compile_context>
chip_gen: v7x
topology: tpu7x:2x2x1
jax: 0.10.0
libtpu: 0.0.40
codegen_flags: <defaults>
</compile_context>

<pallas_src>
import functools

import jax
import jax.numpy as jnp
from jax.experimental import pallas as pl
from jax.experimental.pallas import tpu as pltpu

LANE = 128      # every matmul output width is padded to one full lane tile
SUBLANE = 16    # bf16 sublane tile: keep all weight-slab offsets 16-aligned


def _rup(x, m):
    return (x + m - 1) // m * m


def qnet_kernel(state_ref, w_ref, b_ref, out_ref, *, k1, k2, k3):
    """Fused 3-layer MLP Q-head (z-term pre-folded into bias row 0).

    state_ref : (B, k1)           f32  state, feature dim zero-padded to k1
    w_ref     : (k1+k2+k3, 128)   bf16 packed slab [W1_state ; W2 ; W3]
    b_ref     : (3, 128)          f32  row0 = z@W1_z + b1, row1 = b2, row2 = b3
    out_ref   : (B, 128)          f32  lane-dense Q (cols >= action_size are 0)
    """
    s = state_ref[...].astype(jnp.bfloat16)

    # Static, 16-row-aligned slices of the packed slab (zero-cost ref views).
    w1 = w_ref[0:k1, :]
    w2 = w_ref[k1:k1 + k2, :]
    w3 = w_ref[k1 + k2:k1 + k2 + k3, :]

    # fc1: the batch-invariant z contribution is already inside bias row 0.
    h1 = jnp.maximum(
        jnp.dot(s, w1, preferred_element_type=jnp.float32) + b_ref[0:1, :], 0.0)
    # fc2 / fc3: contract only over the real hidden width (padded lanes of h
    # are exactly zero, so dropping them is zero-work removed, not approximation).
    h2 = jnp.maximum(
        jnp.dot(h1[:, :k2].astype(jnp.bfloat16), w2,
                preferred_element_type=jnp.float32) + b_ref[1:2, :], 0.0)
    q = jnp.dot(h2[:, :k3].astype(jnp.bfloat16), w3,
                preferred_element_type=jnp.float32) + b_ref[2:3, :]
    out_ref[...] = q.astype(out_ref.dtype)   # (B, 128) lane-dense store


def pack_weights(params, latent_size, state_size, h_pad=LANE):
    """One-time packing: constant bf16 weight slab + pieces for the bias slab."""
    w1, b1, w2, b2, w3, b3 = params
    fc1_units = w1.shape[1]
    fc2_units = w2.shape[1]
    action_size = w3.shape[1]
    assert max(fc1_units, fc2_units, action_size) <= h_pad

    k1 = _rup(state_size, SUBLANE)   # fc1 contraction rows (state part only)
    k2 = _rup(fc1_units, SUBLANE)    # fc2 contraction rows
    k3 = _rup(fc2_units, SUBLANE)    # fc3 contraction rows

    def pad_to(a, rows, cols):
        return jnp.pad(a, ((0, rows - a.shape[0]), (0, cols - a.shape[1])))

    # forward() concatenates (z, state): W1[:latent] multiplies z (hoisted to
    # the bias slab), W1[latent:] multiplies state (lives in the kernel slab).
    w1z = pad_to(w1[:latent_size, :], latent_size, h_pad)     # f32, used outside
    w1s = pad_to(w1[latent_size:, :], k1, h_pad)
    w2p = pad_to(w2, k2, h_pad)
    w3p = pad_to(w3, k3, h_pad)
    w_slab = jnp.concatenate([w1s, w2p, w3p], axis=0).astype(jnp.bfloat16)

    b1p = pad_to(b1, 1, h_pad)                                 # f32
    b_rest = jnp.concatenate([pad_to(b2, 1, h_pad),
                              pad_to(b3, 1, h_pad)], axis=0)   # (2, h_pad) f32

    dims = dict(k1=k1, k2=k2, k3=k3, latent_size=latent_size,
                state_size=state_size, action_size=action_size, h_pad=h_pad)
    return dict(w_slab=w_slab, w1z=w1z, b1=b1p, b_rest=b_rest, dims=dims)


def make_bias_slab(z, packed):
    """Rebuild the tiny (3, 128) f32 bias slab whenever z is refreshed."""
    d = packed["dims"]
    zb = z.reshape(1, d["latent_size"]) @ packed["w1z"] + packed["b1"]  # f32
    return jnp.concatenate([zb, packed["b_rest"]], axis=0)


def qnetwork_forward(z, state, packed):
    """z: (latent,), state: (B, state_size) -> Q-values (B, action_size)."""
    d = packed["dims"]
    h_pad, k1, k2, k3 = d["h_pad"], d["k1"], d["k2"], d["k3"]
    B, state_size = state.shape
    assert state_size == d["state_size"]

    # Hoistable by callers that reuse z across many steps.
    b_slab = make_bias_slab(z, packed)

    # Pad batch to a sublane multiple (unmasked stores) and features to k1.
    b_pad = _rup(max(B, 8), 8)
    s_pad = jnp.pad(state, ((0, b_pad - B), (0, k1 - state_size)))

    w_slab = packed["w_slab"]
    cost = pl.CostEstimate(
        flops=2 * b_pad * (k1 + k2 + k3) * h_pad,
        transcendentals=0,
        bytes_accessed=(s_pad.size * 4 + w_slab.size * 2
                        + b_slab.size * 4 + b_pad * h_pad * 4),
    )

    kernel = functools.partial(qnet_kernel, k1=k1, k2=k2, k3=k3)
    vmem = pl.BlockSpec(memory_space=pltpu.MemorySpace.VMEM)

    q_pad = pl.pallas_call(
        kernel,
        out_shape=jax.ShapeDtypeStruct((b_pad, h_pad), jnp.float32),
        in_specs=[vmem, vmem, vmem],
        out_specs=vmem,
        cost_estimate=cost,
    )(s_pad, w_slab, b_slab)
    return q_pad[:B, :d["action_size"]]


def init_params(key, state_size, latent_size, action_size, fc1_units=64, fc2_units=64):
    """Deterministic synthetic weights (PyTorch-style uniform(-1/sqrt(fan_in), +))."""
    def linear(k, fan_in, fan_out):
        kw, kb = jax.random.split(k)
        lim = 1.0 / jnp.sqrt(jnp.float32(fan_in))
        w = jax.random.uniform(kw, (fan_in, fan_out), jnp.float32, -lim, lim)
        b = jax.random.uniform(kb, (1, fan_out), jnp.float32, -lim, lim)
        return w, b

    k1, k2, k3 = jax.random.split(key, 3)
    w1, b1 = linear(k1, state_size + latent_size, fc1_units)
    w2, b2 = linear(k2, fc1_units, fc2_units)
    w3, b3 = linear(k3, fc2_units, action_size)
    return (w1, b1, w2, b2, w3, b3)


if __name__ == "__main__":
    STATE_SIZE = 8
    LATENT_SIZE = 8
    ACTION_SIZE = 4
    BATCH = 8

    key = jax.random.PRNGKey(0)
    k_params, k_z, k_state = jax.random.split(key, 3)

    params = init_params(k_params, STATE_SIZE, LATENT_SIZE, ACTION_SIZE)
    packed = pack_weights(params, LATENT_SIZE, STATE_SIZE)

    z = jax.random.normal(k_z, (LATENT_SIZE,), jnp.float32)
    state = jax.random.normal(k_state, (BATCH, STATE_SIZE), jnp.float32)

    out = qnetwork_forward(z, state, packed)
    out = jax.block_until_ready(out)

    # Cross-check against a plain-JAX f32 reference of the original module math.
    # Tolerance is loosened because the kernel deliberately uses bf16 weights
    # (f32 accumulation) per the perf review.
    w1, b1, w2, b2, w3, b3 = params
    ctx = jnp.concatenate([jnp.broadcast_to(z, (BATCH, LATENT_SIZE)), state], axis=1)
    ref = jnp.maximum(ctx @ w1 + b1, 0.0)
    ref = jnp.maximum(ref @ w2 + b2, 0.0)
    ref = ref @ w3 + b3

    assert out.shape == (BATCH, ACTION_SIZE)
    assert jnp.allclose(out, ref, atol=5e-2, rtol=5e-2), (
        f"max abs diff {jnp.max(jnp.abs(out - ref))}")

    print("KERNEL_OK")
</pallas_src>

<mosaic_0001>
module attributes {stable_mosaic.version = 11 : i64} {
  func.func @qnet_kernel(%arg0: memref<8x16xf32, #tpu.memory_space<vmem>>, %arg1: memref<144x128xbf16, #tpu.memory_space<vmem>>, %arg2: memref<3x128xf32, #tpu.memory_space<vmem>>, %arg3: memref<8x128xf32, #tpu.memory_space<vmem>>) attributes {dimension_semantics = [], scalar_prefetch = 0 : i64, scratch_operands = 0 : i64, tpu.core_type = #tpu.core_type<tc>} {
    %c0 = arith.constant 0 : index
    %c0_0 = arith.constant 0 : index
    %0 = vector.load %arg0[%c0, %c0_0] : memref<8x16xf32, #tpu.memory_space<vmem>>, vector<8x16xf32>
    %1 = arith.truncf %0 : vector<8x16xf32> to vector<8x16xbf16>
    %c0_1 = arith.constant 0 : index
    %c0_2 = arith.constant 0 : index
    %2 = vector.load %arg1[%c0_1, %c0_2] : memref<144x128xbf16, #tpu.memory_space<vmem>>, vector<16x128xbf16>
    %c16 = arith.constant 16 : index
    %c0_3 = arith.constant 0 : index
    %3 = vector.load %arg1[%c16, %c0_3] : memref<144x128xbf16, #tpu.memory_space<vmem>>, vector<64x128xbf16>
    %c80 = arith.constant 80 : index
    %c0_4 = arith.constant 0 : index
    %4 = vector.load %arg1[%c80, %c0_4] : memref<144x128xbf16, #tpu.memory_space<vmem>>, vector<64x128xbf16>
    %cst = arith.constant dense<0.000000e+00> : vector<8x128xf32>
    %5 = tpu.matmul %1, %2, %cst {dimension_numbers = #tpu.dot_dimension_numbers<[1], [0], [0], [1], [0, 0, 1, 1], [], []>} : vector<8x16xbf16>, vector<16x128xbf16>, vector<8x128xf32> -> vector<8x128xf32>
    %c0_5 = arith.constant 0 : index
    %c0_6 = arith.constant 0 : index
    %6 = vector.load %arg2[%c0_5, %c0_6] : memref<3x128xf32, #tpu.memory_space<vmem>>, vector<1x128xf32>
    %7 = vector.broadcast %6 : vector<1x128xf32> to vector<8x128xf32>
    %8 = arith.addf %5, %7 : vector<8x128xf32>
    %cst_7 = arith.constant 0.000000e+00 : f32
    %9 = vector.broadcast %cst_7 : f32 to vector<8x128xf32>
    %10 = arith.maximumf %8, %9 : vector<8x128xf32>
    %11 = vector.extract_strided_slice %10 {offsets = [0, 0], sizes = [8, 64], strides = [1, 1]} : vector<8x128xf32> to vector<8x64xf32>
    %12 = arith.truncf %11 : vector<8x64xf32> to vector<8x64xbf16>
    %cst_8 = arith.constant dense<0.000000e+00> : vector<8x128xf32>
    %13 = tpu.matmul %12, %3, %cst_8 {dimension_numbers = #tpu.dot_dimension_numbers<[1], [0], [0], [1], [0, 0, 1, 1], [], []>} : vector<8x64xbf16>, vector<64x128xbf16>, vector<8x128xf32> -> vector<8x128xf32>
    %c1 = arith.constant 1 : index
    %c0_9 = arith.constant 0 : index
    %14 = vector.load %arg2[%c1, %c0_9] : memref<3x128xf32, #tpu.memory_space<vmem>>, vector<1x128xf32>
    %15 = vector.broadcast %14 : vector<1x128xf32> to vector<8x128xf32>
    %16 = arith.addf %13, %15 : vector<8x128xf32>
    %cst_10 = arith.constant 0.000000e+00 : f32
    %17 = vector.broadcast %cst_10 : f32 to vector<8x128xf32>
    %18 = arith.maximumf %16, %17 : vector<8x128xf32>
    %19 = vector.extract_strided_slice %18 {offsets = [0, 0], sizes = [8, 64], strides = [1, 1]} : vector<8x128xf32> to vector<8x64xf32>
    %20 = arith.truncf %19 : vector<8x64xf32> to vector<8x64xbf16>
    %cst_11 = arith.constant dense<0.000000e+00> : vector<8x128xf32>
    %21 = tpu.matmul %20, %4, %cst_11 {dimension_numbers = #tpu.dot_dimension_numbers<[1], [0], [0], [1], [0, 0, 1, 1], [], []>} : vector<8x64xbf16>, vector<64x128xbf16>, vector<8x128xf32> -> vector<8x128xf32>
    %c2 = arith.constant 2 : index
    %c0_12 = arith.constant 0 : index
    %22 = vector.load %arg2[%c2, %c0_12] : memref<3x128xf32, #tpu.memory_space<vmem>>, vector<1x128xf32>
    %23 = vector.broadcast %22 : vector<1x128xf32> to vector<8x128xf32>
    %24 = arith.addf %21, %23 : vector<8x128xf32>
    %c0_13 = arith.constant 0 : index
    %c0_14 = arith.constant 0 : index
    %25 = vector.load %arg3[%c0_13, %c0_14] : memref<8x128xf32, #tpu.memory_space<vmem>>, vector<8x128xf32>
    tpu.vector_store %arg3[%c0_13, %c0_14], %24 {strides = array<i32>} : memref<8x128xf32, #tpu.memory_space<vmem>>, vector<8x128xf32>,
    return
  }
}

</mosaic_0001>

<llo_original>
// kernel: tpu_custom_call.1
$region0: #{tpu_custom_call.1}
  #allocation0 [shape = 'u32[]', space=smem, size = 0x4, offset = 0x4, fixed_abs, tag = 'smem constant byte address 0x4 - core index']
  #allocation1 [shape = 'u32[144,128]{1,0:T(1,128)}', space=vmem, size = 0x12000, scoped, tag = 'internal scratch']
  %s0 = inlined_call_operand.hbm [shape: f32[8,16], index: 0, kind: input, shape index: {}]
  %s1 = inlined_call_operand.hbm [shape: bf16[144,128], index: 1, kind: input, shape index: {}]
  %s2 = inlined_call_operand.vmem [shape: f32[3,128], index: 2, kind: input, shape index: {}]
  %s3 = inlined_call_operand.hbm [shape: f32[8,128], index: 3, kind: output, shape index: {}]
  %s4 = sld [smem:[#allocation0]]
  $region30: #{tpu_custom_call.1} parent=0
    _
  %s6 = ssub.s32 1, %s4
  %s7 = scalar_select 0, %s6, %s4
  $region1: #{tpu_custom_call.1} parent=0
    #allocation2 [shape = 'u8[4096]{0}', space=vmem, size = 0x1000, scoped, tag = 'input window, operand 0, single buffered']
    #allocation3 [shape = 's32[1]{0}', space=sflag, size = 0x4, scoped, tag = 'scoped memory for tpu_custom_call.1']
    #allocation4 [shape = 's32[1]{0}', space=sflag, size = 0x4, scoped, tag = 'scoped memory for tpu_custom_call.1']
    #allocation5 [shape = 'u8[36864]{0}', space=vmem, size = 0x9000, scoped, tag = 'input window, operand 1, single buffered']
    #allocation6 [shape = 's32[1]{0}', space=sflag, size = 0x4, scoped, tag = 'scoped memory for tpu_custom_call.1']
    #allocation7 [shape = 'u8[4096]{0}', space=vmem, size = 0x1000, scoped, tag = 'output window, operand 0, single buffered']
    %8 = vsyncpa [#allocation3], 0
    %9 = vsyncpa [#allocation6], 0
    %10 = vsyncpa [#allocation4], 0
    // Predicated region
    $region2: #{tpu_custom_call.1} parent=1 // pred_check
      _
    $region3: #{tpu_custom_call.1} parent=1 // pred_check_branch
      %12 = sbr.rel (0) target = $region5
    $region4: #{tpu_custom_call.1} parent=1 // pred_region
      %s14 = ssub.s32 128, 128
      %15 = vsyncadd [#allocation3], %s14
      %s17 = sshll.u32 [#allocation2], 4
      %s18 = int_to_ptr.vmem [resolvable:$true] %s17
      %20 = dma.hbm_to_vmem [thread:$0]  %s0, 128, %s18, [#allocation3]
    $region5: #{tpu_custom_call.1} parent=1 // pred_fallthru
      _
    // Predicated region
    $region6: #{tpu_custom_call.1} parent=1 // pred_check
      _
    $region7: #{tpu_custom_call.1} parent=1 // pred_check_branch
      %22 = sbr.rel (0) target = $region9
    $region8: #{tpu_custom_call.1} parent=1 // pred_region
      %s24 = ssub.s32 1152, 1152
      %25 = vsyncadd [#allocation6], %s24
      %s26 = sshll.u32 [#allocation5], 4
      %s27 = int_to_ptr.vmem [resolvable:$true] %s26
      %32 = dma.hbm_to_vmem [thread:$0]  %s1, 1152, %s27, [#allocation6], 64, 64, 4
    $region9: #{tpu_custom_call.1} parent=1 // pred_fallthru
      _
    // Predicated region
    $region10: #{tpu_custom_call.1} parent=1 // pred_check
      _
    $region11: #{tpu_custom_call.1} parent=1 // pred_check_branch
      %34 = sbr.rel (0) target = $region13
    $region12: #{tpu_custom_call.1} parent=1 // pred_region
      _
    $region13: #{tpu_custom_call.1} parent=1 // pred_fallthru
      _
    // Predicated region
    $region14: #{tpu_custom_call.1} parent=1 // pred_check
      _
    $region15: #{tpu_custom_call.1} parent=1 // pred_check_branch
      %36 = sbr.rel (0) target = $region17
    $region16: #{tpu_custom_call.1} parent=1 // pred_region
      %37 = dma.done [#allocation3], 128
    $region17: #{tpu_custom_call.1} parent=1 // pred_fallthru
      _
    // Predicated region
    $region18: #{tpu_custom_call.1} parent=1 // pred_check
      _
    $region19: #{tpu_custom_call.1} parent=1 // pred_check_branch
      %39 = sbr.rel (0) target = $region21
    $region20: #{tpu_custom_call.1} parent=1 // pred_region
      %40 = dma.done [#allocation6], 1152
    $region21: #{tpu_custom_call.1} parent=1 // pred_fallthru
      _
    %v42 = vld [vmem:[#allocation2] sm:$0xff]
    %v43 = vpack.c.bf16 %v42, %v42
    %v44 = vld [vmem:[#allocation5] sm:$0xf]
    %v45 = vld [vmem:[#allocation5 + $0x4] sm:$0xf]
    %v46 = vld [vmem:[#allocation5 + $0x8] sm:$0xf]
    %v47 = vld [vmem:[#allocation5 + $0xc] sm:$0xf]
    %v48 = vld [vmem:[#allocation5 + $0x10] sm:$0xf]
    %v49 = vld [vmem:[#allocation5 + $0x14] sm:$0xf]
    %v50 = vld [vmem:[#allocation5 + $0x18] sm:$0xf]
    %v51 = vld [vmem:[#allocation5 + $0x1c] sm:$0xf]
    %v52 = vld [vmem:[#allocation5 + $0x20] sm:$0xf]
    %v53 = vld [vmem:[#allocation5 + $0x24] sm:$0xf]
    %v54 = vld [vmem:[#allocation5 + $0x28] sm:$0xf]
    %v55 = vld [vmem:[#allocation5 + $0x2c] sm:$0xf]
    %v56 = vld [vmem:[#allocation5 + $0x30] sm:$0xf]
    %v57 = vld [vmem:[#allocation5 + $0x34] sm:$0xf]
    %v58 = vld [vmem:[#allocation5 + $0x38] sm:$0xf]
    %v59 = vld [vmem:[#allocation5 + $0x3c] sm:$0xf]
    %v60 = vld [vmem:[#allocation5 + $0x40] sm:$0xf]
    %v61 = vld [vmem:[#allocation5 + $0x44] sm:$0xf]
    %v62 = vld [vmem:[%s2] sm:$0x1]
    %v63 = vlaneseq
    %v64 = vshrl.u32 %v63, 7
    %v65 = vsub.s32 0, %v64
    %v66 = vrot.slane %v62, %v65
    %v69 = vunpack.c.l.b16 %v44
    %v70 = vunpack.c.l.b16 %v45
    %v71 = vpack.c.b16 %v70, %v69
    %vm73 = vcmask 130048
    %v75 = vsel %vm73, %v43, 0
    %77 = vmatprep.subr.bf16.mxu0 0
    %78 = vmatpush1.bf16.msra.mxu0 %v71
    %79 = vmatprep.subr.bf16.mxu0 0
    %80 = vmatpush1.bf16.msra.mxu0 0
    %81 = vmatprep.subr.bf16.mxu0 0
    %82 = vmatpush1.bf16.msra.mxu0 0
    %83 = vmatprep.subr.bf16.mxu0 0
    %84 = vmatpush1.bf16.msra.mxu0 0
    %85 = vmatprep.subr.bf16.mxu0 0
    %86 = vmatpush1.bf16.msra.mxu0 0
    %87 = vmatprep.subr.bf16.mxu0 0
    %88 = vmatpush1.bf16.msra.mxu0 0
    %89 = vmatprep.subr.bf16.mxu0 0
    %90 = vmatpush1.bf16.msra.mxu0 0
    %91 = vmatprep.subr.bf16.mxu0 0
    %92 = vmatpush1.bf16.msra.mxu0 0
    %93 = vmatprep.subr.bf16.mxu0 0
    %94 = vmatpush1.bf16.msra.mxu0 0
    %95 = vmatprep.subr.bf16.mxu0 0
    %96 = vmatpush1.bf16.msra.mxu0 0
    %97 = vmatprep.subr.bf16.mxu0 0
    %98 = vmatpush1.bf16.msra.mxu0 0
    %99 = vmatprep.subr.bf16.mxu0 0
    %100 = vmatpush1.bf16.msra.mxu0 0
    %101 = vmatprep.subr.bf16.mxu0 0
    %102 = vmatpush1.bf16.msra.mxu0 0
    %103 = vmatprep.subr.bf16.mxu0 0
    %104 = vmatpush1.bf16.msra.mxu0 0
    %105 = vmatprep.subr.bf16.mxu0 0
    %106 = vmatpush1.bf16.msra.mxu0 0
    %107 = vmatprep.subr.bf16.mxu0 0
    %108 = vmatpush1.bf16.msra.mxu0 0
    %109 = vmatprep.mubr.bf16.mxu0 0
    %110 = vmatmul.mubr.bf16.gmra.mrb[0].mxu0 %v75
    %v111 = vpop.f32.mrb[0].mxu0
    %v112 = vadd.f32 %v66, %v111
    %v113 = vpop.f32.mrb[0].mxu0
    %v114 = vpop.f32.mrb[0].mxu0
    %v115 = vpop.f32.mrb[0].mxu0
    %116 = vdwg.mxu0
    %v117 = vmax.f32 %v112, 0.0
    %v118 = vpack.c.bf16 %v117, %v117
    %v119 = vld [vmem:[%s2 + $0x1] sm:$0x1]
    %v120 = vlaneseq
    %v121 = vshrl.u32 %v120, 7
    %v122 = vsub.s32 0, %v121
    %v123 = vrot.slane %v119, %v122
    %v132 = vunpack.c.l.b16 %v46
    %v133 = vunpack.c.l.b16 %v47
    %v134 = vunpack.c.l.b16 %v48
    %v135 = vunpack.c.l.b16 %v49
    %v136 = vunpack.c.l.b16 %v50
    %v137 = vunpack.c.l.b16 %v51
    %v138 = vunpack.c.l.b16 %v52
    %v139 = vunpack.c.l.b16 %v53
    %v140 = vpack.c.b16 %v133, %v132
    %v141 = vpack.c.b16 %v135, %v134
    %v142 = vpack.c.b16 %v137, %v136
    %v143 = vpack.c.b16 %v139, %v138
    %vm148 = vcmask 523264
    %v150 = vsel %vm148, %v118, 0
    %152 = vmatprep.subr.bf16.mxu0 0
    %153 = vmatpush1.bf16.msra.mxu0 %v140
    %154 = vmatprep.subr.bf16.mxu0 0
    %155 = vmatpush1.bf16.msra.mxu0 %v141
    %156 = vmatprep.subr.bf16.mxu0 0
    %157 = vmatpush1.bf16.msra.mxu0 %v142
    %158 = vmatprep.subr.bf16.mxu0 0
    %159 = vmatpush1.bf16.msra.mxu0 %v143
    %160 = vmatprep.subr.bf16.mxu0 0
    %161 = vmatpush1.bf16.msra.mxu0 0
    %162 = vmatprep.subr.bf16.mxu0 0
    %163 = vmatpush1.bf16.msra.mxu0 0
    %164 = vmatprep.subr.bf16.mxu0 0
    %165 = vmatpush1.bf16.msra.mxu0 0
    %166 = vmatprep.subr.bf16.mxu0 0
    %167 = vmatpush1.bf16.msra.mxu0 0
    %168 = vmatprep.subr.bf16.mxu0 0
    %169 = vmatpush1.bf16.msra.mxu0 0
    %170 = vmatprep.subr.bf16.mxu0 0
    %171 = vmatpush1.bf16.msra.mxu0 0
    %172 = vmatprep.subr.bf16.mxu0 0
    %173 = vmatpush1.bf16.msra.mxu0 0
    %174 = vmatprep.subr.bf16.mxu0 0
    %175 = vmatpush1.bf16.msra.mxu0 0
    %176 = vmatprep.subr.bf16.mxu0 0
    %177 = vmatpush1.bf16.msra.mxu0 0
    %178 = vmatprep.subr.bf16.mxu0 0
    %179 = vmatpush1.bf16.msra.mxu0 0
    %180 = vmatprep.subr.bf16.mxu0 0
    %181 = vmatpush1.bf16.msra.mxu0 0
    %182 = vmatprep.subr.bf16.mxu0 0
    %183 = vmatpush1.bf16.msra.mxu0 0
    %184 = vmatprep.mubr.bf16.mxu0 0
    %185 = vmatmul.mubr.bf16.gmra.mrb[0].mxu0 %v150
    %v186 = vpop.f32.mrb[0].mxu0
    %v187 = vadd.f32 %v123, %v186
    %v188 = vpop.f32.mrb[0].mxu0
    %v189 = vpop.f32.mrb[0].mxu0
    %v190 = vpop.f32.mrb[0].mxu0
    %191 = vdwg.mxu0
    %v192 = vmax.f32 %v187, 0.0
    %v193 = vpack.c.bf16 %v192, %v192
    %v194 = vld [vmem:[%s2 + $0x2] sm:$0x1]
    %v195 = vlaneseq
    %v196 = vshrl.u32 %v195, 7
    %v197 = vsub.s32 0, %v196
    %v198 = vrot.slane %v194, %v197
    %v207 = vunpack.c.l.b16 %v54
    %v208 = vunpack.c.l.b16 %v55
    %v209 = vunpack.c.l.b16 %v56
    %v210 = vunpack.c.l.b16 %v57
    %v211 = vunpack.c.l.b16 %v58
    %v212 = vunpack.c.l.b16 %v59
    %v213 = vunpack.c.l.b16 %v60
    %v214 = vunpack.c.l.b16 %v61
    %v215 = vpack.c.b16 %v208, %v207
    %v216 = vpack.c.b16 %v210, %v209
    %v217 = vpack.c.b16 %v212, %v211
    %v218 = vpack.c.b16 %v214, %v213
    %v224 = vsel %vm148, %v193, 0
    %226 = vmatprep.subr.bf16.mxu0 0
    %227 = vmatpush1.bf16.msra.mxu0 %v215
    %228 = vmatprep.subr.bf16.mxu0 0
    %229 = vmatpush1.bf16.msra.mxu0 %v216
    %230 = vmatprep.subr.bf16.mxu0 0
    %231 = vmatpush1.bf16.msra.mxu0 %v217
    %232 = vmatprep.subr.bf16.mxu0 0
    %233 = vmatpush1.bf16.msra.mxu0 %v218
    %234 = vmatprep.subr.bf16.mxu0 0
    %235 = vmatpush1.bf16.msra.mxu0 0
    %236 = vmatprep.subr.bf16.mxu0 0
    %237 = vmatpush1.bf16.msra.mxu0 0
    %238 = vmatprep.subr.bf16.mxu0 0
    %239 = vmatpush1.bf16.msra.mxu0 0
    %240 = vmatprep.subr.bf16.mxu0 0
    %241 = vmatpush1.bf16.msra.mxu0 0
    %242 = vmatprep.subr.bf16.mxu0 0
    %243 = vmatpush1.bf16.msra.mxu0 0
    %244 = vmatprep.subr.bf16.mxu0 0
    %245 = vmatpush1.bf16.msra.mxu0 0
    %246 = vmatprep.subr.bf16.mxu0 0
    %247 = vmatpush1.bf16.msra.mxu0 0
    %248 = vmatprep.subr.bf16.mxu0 0
    %249 = vmatpush1.bf16.msra.mxu0 0
    %250 = vmatprep.subr.bf16.mxu0 0
    %251 = vmatpush1.bf16.msra.mxu0 0
    %252 = vmatprep.subr.bf16.mxu0 0
    %253 = vmatpush1.bf16.msra.mxu0 0
    %254 = vmatprep.subr.bf16.mxu0 0
    %255 = vmatpush1.bf16.msra.mxu0 0
    %256 = vmatprep.subr.bf16.mxu0 0
    %257 = vmatpush1.bf16.msra.mxu0 0
    %258 = vmatprep.mubr.bf16.mxu0 0
    %259 = vmatmul.mubr.bf16.gmra.mrb[0].mxu0 %v224
    %v260 = vpop.f32.mrb[0].mxu0
    %v261 = vadd.f32 %v198, %v260
    %v262 = vpop.f32.mrb[0].mxu0
    %v263 = vpop.f32.mrb[0].mxu0
    %v264 = vpop.f32.mrb[0].mxu0
    %265 = vdwg.mxu0
    %266 = vst [vmem:[#allocation7] sm:$0xff] %v261
    // Predicated region
    $region22: #{tpu_custom_call.1} parent=1 // pred_check
      _
    $region23: #{tpu_custom_call.1} parent=1 // pred_check_branch
      %268 = sbr.rel (0) target = $region25
    $region24: #{tpu_custom_call.1} parent=1 // pred_region
      %s270 = ssub.s32 128, 128
      %271 = vsyncadd [#allocation4], %s270
      %s273 = sshll.u32 [#allocation7], 4
      %s274 = int_to_ptr.vmem [resolvable:$true] %s273
      %276 = dma.vmem_to_hbm [thread:$0]  %s274, 128, %s3, [#allocation4]
    $region25: #{tpu_custom_call.1} parent=1 // pred_fallthru
      _
    // Predicated region
    $region26: #{tpu_custom_call.1} parent=1 // pred_check
      _
    $region27: #{tpu_custom_call.1} parent=1 // pred_check_branch
      %278 = sbr.rel (0) target = $region29
    $region28: #{tpu_custom_call.1} parent=1 // pred_region
      %279 = dma.done [#allocation4], 128
    $region29: #{tpu_custom_call.1} parent=1 // pred_fallthru
      _
    %280 = vsyncpa [#allocation3], 1
    %281 = vsyncpa [#allocation6], 1
    %282 = vsyncpa [#allocation4], 1

</llo_original>
